<compile_context>
chip_gen: v6e
topology: v6e:2x2x1
jax: 0.10.0
libtpu: 0.0.40
codegen_flags: <defaults>
</compile_context>

<pallas_src>
import jax
import jax.numpy as jnp
from jax.experimental import pallas as pl
from jax.experimental.pallas import tpu as pltpu

N_SRC = 2        # number of sources
N_FILT = 32      # encoder filters (feature dim N)
KERNEL = 16      # encoder kernel == stride (frame length L)
PACK = 8         # frames packed per kernel row -> 8*L = 128 lanes
TILE_G_MAX = 512  # packed rows per grid step (= 4096 original frames)


def _round_up(x, m):
    return (x + m - 1) // m * m


def _block_diag(w, reps):
    """(k, n) -> (reps*k, reps*n) block-diagonal replication (host-side)."""
    k, n = w.shape
    eye = jnp.eye(reps, dtype=w.dtype)
    return (eye[:, None, :, None] * w[None, :, None, :]).reshape(reps * k, reps * n)


def masking_net_kernel(frames_ref, wenc_ref, benc_ref, wmask_ref, bmask_ref,
                       wdec_ref, out_ref):
    """One (batch, row-tile) of packed frames through the whole forward pass.

    frames_ref : (1, TG, PACK*L)        packed mixture frames
    wenc_ref   : (PACK*L, PACK*N)       block-diagonal encoder weight
    benc_ref   : (1, PACK*N)
    wmask_ref  : (PACK*N, S*PACK*N)     masker weight, source-major columns
    bmask_ref  : (1, S*PACK*N)
    wdec_ref   : (PACK*N, PACK*L)       block-diagonal decoder weight
    out_ref    : (1, S, TG, PACK*L)
    """
    frames = frames_ref[0]                                        # (TG, 128)

    # encoder (Conv1d kernel==stride -> per-frame matmul) + ReLU
    tf_repr = jnp.dot(frames, wenc_ref[...],
                      preferred_element_type=jnp.float32) + benc_ref[...]
    tf_repr = jnp.maximum(tf_repr, 0.0)                           # (TG, PACK*N)

    # masker: pointwise conv over features + sigmoid.  Columns are source-major
    # so masks[:, s*PACK*N + f*N + j] lines up with tf_repr[:, f*N + j].
    logits = jnp.dot(tf_repr, wmask_ref[...],
                     preferred_element_type=jnp.float32) + bmask_ref[...]
    masks = jax.nn.sigmoid(logits)                                # (TG, S*PACK*N)

    pn = tf_repr.shape[-1]                                        # PACK*N
    for s in range(N_SRC):  # static unroll over sources
        # est_masks * tf_repr.unsqueeze(1)  (one source at a time, pure VPU)
        masked = masks[:, s * pn:(s + 1) * pn] * tf_repr          # (TG, PACK*N)
        # decoder (ConvTranspose1d kernel==stride -> per-frame matmul)
        dec = jnp.dot(masked, wdec_ref[...],
                      preferred_element_type=jnp.float32)         # (TG, PACK*L)
        out_ref[0, s, :, :] = dec                                 # lane-dense store


def masking_network_forward(x, params, *, tile_g_max=TILE_G_MAX):
    """x: (B, 1, T) float32  ->  (B, n_src, T) float32."""
    w_enc, b_enc, w_mask, b_mask, w_dec = params
    B, C, T = x.shape
    assert C == 1, "free encoder assumes mono input channel"
    L, N = w_enc.shape
    S = N_SRC
    assert T % L == 0, "decoder must reconstruct the exact input length"
    F = T // L

    # ---- pack PACK frames per row (pad frame count with zeros; sliced off later)
    G_raw = pl.cdiv(F, PACK)
    TG = min(tile_g_max, _round_up(G_raw, 8))      # sublane-aligned row tile
    G = _round_up(G_raw, TG)                       # padded packed-row count
    F_pad = G * PACK

    frames = x.reshape(B, F, L)
    frames = jnp.pad(frames, ((0, 0), (0, F_pad - F), (0, 0)))
    frames_pk = frames.reshape(B, G, PACK * L)                    # (B, G, 128)

    # ---- host-built packed weights (tiny; block-diagonal over the PACK frames)
    w_enc_pk = _block_diag(w_enc, PACK)                           # (128, PACK*N)
    b_enc_pk = jnp.tile(b_enc, (1, PACK))                         # (1, PACK*N)
    # masker weight with source-major output columns:
    #   w_mask_pk[f*N + i, s*PACK*N + f*N + j] = w_mask[i, s*N + j]
    wm = w_mask.reshape(N, S, N)
    eye = jnp.eye(PACK, dtype=w_mask.dtype)
    w_mask_pk = (eye[:, None, None, :, None]
                 * wm[None, :, :, None, :]).reshape(PACK * N, S * PACK * N)
    b_mask_pk = jnp.broadcast_to(b_mask.reshape(1, S, 1, N),
                                 (1, S, PACK, N)).reshape(1, S * PACK * N)
    w_dec_pk = _block_diag(w_dec, PACK)                           # (PACK*N, 128)

    grid = (B, G // TG)
    out = pl.pallas_call(
        masking_net_kernel,
        out_shape=jax.ShapeDtypeStruct((B, S, G, PACK * L), jnp.float32),
        grid=grid,
        in_specs=[
            pl.BlockSpec((1, TG, PACK * L), lambda b, g: (b, g, 0)),
            pl.BlockSpec((PACK * L, PACK * N), lambda b, g: (0, 0)),
            pl.BlockSpec((1, PACK * N), lambda b, g: (0, 0)),
            pl.BlockSpec((PACK * N, S * PACK * N), lambda b, g: (0, 0)),
            pl.BlockSpec((1, S * PACK * N), lambda b, g: (0, 0)),
            pl.BlockSpec((PACK * N, PACK * L), lambda b, g: (0, 0)),
        ],
        out_specs=pl.BlockSpec((1, S, TG, PACK * L), lambda b, g: (b, 0, g, 0)),
        compiler_params=pltpu.CompilerParams(
            dimension_semantics=("parallel", "parallel")),
    )(frames_pk, w_enc_pk, b_enc_pk, w_mask_pk, b_mask_pk, w_dec_pk)

    # (B, S, G, PACK*L) -> (B, S, F_pad*L) -> slice to T.
    # Pure row-major reinterpretation + tail slice: no transpose pass.
    decoded = out.reshape(B, S, F_pad * L)[:, :, :T]
    assert decoded.shape[-1] == x.shape[-1]   # same assert as the PyTorch module
    return decoded


def reference_forward(x, params):
    """Pure-JAX reference of the same forward pass (for correctness check)."""
    w_enc, b_enc, w_mask, b_mask, w_dec = params
    B, C, T = x.shape
    L, N = w_enc.shape
    F = T // L
    frames = x.reshape(B * F, L)
    tf = jnp.maximum(frames @ w_enc + b_enc, 0.0)
    masks = jax.nn.sigmoid(tf @ w_mask + b_mask).reshape(B * F, N_SRC, N)
    masked = masks * tf[:, None, :]
    dec = jnp.einsum("bsn,nl->bsl", masked, w_dec)
    return dec.reshape(B, F, N_SRC, L).transpose(0, 2, 1, 3).reshape(B, N_SRC, T)


if __name__ == "__main__":
    key = jax.random.PRNGKey(0)
    kx, k1, k2, k3, k4, k5 = jax.random.split(key, 6)

    B, T = 2, 2064                     # T % KERNEL == 0; 129 frames -> exercises padding
    x = jax.random.normal(kx, (B, 1, T), dtype=jnp.float32)

    # deterministic synthetic parameters (shapes implied by the module's submodules)
    w_enc = 0.1 * jax.random.normal(k1, (KERNEL, N_FILT), jnp.float32)
    b_enc = 0.01 * jax.random.normal(k2, (1, N_FILT), jnp.float32)
    w_mask = 0.1 * jax.random.normal(k3, (N_FILT, N_SRC * N_FILT), jnp.float32)
    b_mask = 0.01 * jax.random.normal(k4, (1, N_SRC * N_FILT), jnp.float32)
    w_dec = 0.1 * jax.random.normal(k5, (N_FILT, KERNEL), jnp.float32)
    params = (w_enc, b_enc, w_mask, b_mask, w_dec)

    out = masking_network_forward(x, params)
    out = jax.block_until_ready(out)

    ref = reference_forward(x, params)
    assert out.shape == (B, N_SRC, T)
    # slightly looser than 1e-5: packed block-diagonal matmuls change f32
    # accumulation order vs. the reference
    assert jnp.allclose(out, ref, atol=1e-4, rtol=1e-4), \
        float(jnp.max(jnp.abs(out - ref)))
    print("KERNEL_OK")
</pallas_src>

<mosaic_0001>
module attributes {stable_mosaic.version = 11 : i64} {
  func.func @masking_net_kernel(%arg0: i32, %arg1: i32, %arg2: memref<1x24x128xf32, #tpu.memory_space<vmem>>, %arg3: memref<128x256xf32, #tpu.memory_space<vmem>>, %arg4: memref<1x256xf32, #tpu.memory_space<vmem>>, %arg5: memref<256x512xf32, #tpu.memory_space<vmem>>, %arg6: memref<1x512xf32, #tpu.memory_space<vmem>>, %arg7: memref<256x128xf32, #tpu.memory_space<vmem>>, %arg8: memref<1x2x24x128xf32, #tpu.memory_space<vmem>>) attributes {dimension_semantics = [#tpu.dimension_semantics<parallel>, #tpu.dimension_semantics<parallel>], iteration_bounds = array<i64: 2, 1>, scalar_prefetch = 0 : i64, scratch_operands = 0 : i64, tpu.core_type = #tpu.core_type<tc>, window_params = [{transform_indices = @transform_0, window_bounds = array<i64: 1, 24, 128>}, {pipeline_mode = #tpu.pipeline_mode<synchronous>, transform_indices = @transform_1, window_bounds = array<i64: 128, 256>}, {pipeline_mode = #tpu.pipeline_mode<synchronous>, transform_indices = @transform_2, window_bounds = array<i64: 1, 256>}, {pipeline_mode = #tpu.pipeline_mode<synchronous>, transform_indices = @transform_3, window_bounds = array<i64: 256, 512>}, {pipeline_mode = #tpu.pipeline_mode<synchronous>, transform_indices = @transform_4, window_bounds = array<i64: 1, 512>}, {pipeline_mode = #tpu.pipeline_mode<synchronous>, transform_indices = @transform_5, window_bounds = array<i64: 256, 128>}, {transform_indices = @transform_6, window_bounds = array<i64: 1, 2, 24, 128>}]} {
    %c0 = arith.constant 0 : index
    %c0_0 = arith.constant 0 : index
    %c0_1 = arith.constant 0 : index
    %0 = vector.load %arg2[%c0, %c0_0, %c0_1] : memref<1x24x128xf32, #tpu.memory_space<vmem>>, vector<1x24x128xf32>
    %1 = vector.shape_cast %0 : vector<1x24x128xf32> to vector<24x128xf32>
    %c0_2 = arith.constant 0 : index
    %c0_3 = arith.constant 0 : index
    %2 = vector.load %arg3[%c0_2, %c0_3] : memref<128x256xf32, #tpu.memory_space<vmem>>, vector<128x256xf32>
    %cst = arith.constant dense<0.000000e+00> : vector<24x256xf32>
    %3 = tpu.matmul %1, %2, %cst {dimension_numbers = #tpu.dot_dimension_numbers<[1], [0], [0], [1], [0, 0, 1, 1], [], []>} : vector<24x128xf32>, vector<128x256xf32>, vector<24x256xf32> -> vector<24x256xf32>
    %c0_4 = arith.constant 0 : index
    %c0_5 = arith.constant 0 : index
    %4 = vector.load %arg4[%c0_4, %c0_5] : memref<1x256xf32, #tpu.memory_space<vmem>>, vector<1x256xf32>
    %5 = vector.broadcast %4 : vector<1x256xf32> to vector<24x256xf32>
    %6 = arith.addf %3, %5 : vector<24x256xf32>
    %cst_6 = arith.constant 0.000000e+00 : f32
    %7 = vector.broadcast %cst_6 : f32 to vector<24x256xf32>
    %8 = arith.maximumf %6, %7 : vector<24x256xf32>
    %c0_7 = arith.constant 0 : index
    %c0_8 = arith.constant 0 : index
    %9 = vector.load %arg5[%c0_7, %c0_8] : memref<256x512xf32, #tpu.memory_space<vmem>>, vector<256x512xf32>
    %cst_9 = arith.constant dense<0.000000e+00> : vector<24x512xf32>
    %10 = tpu.matmul %8, %9, %cst_9 {dimension_numbers = #tpu.dot_dimension_numbers<[1], [0], [0], [1], [0, 0, 1, 1], [], []>} : vector<24x256xf32>, vector<256x512xf32>, vector<24x512xf32> -> vector<24x512xf32>
    %c0_10 = arith.constant 0 : index
    %c0_11 = arith.constant 0 : index
    %11 = vector.load %arg6[%c0_10, %c0_11] : memref<1x512xf32, #tpu.memory_space<vmem>>, vector<1x512xf32>
    %12 = vector.broadcast %11 : vector<1x512xf32> to vector<24x512xf32>
    %13 = arith.addf %10, %12 : vector<24x512xf32>
    %14 = arith.negf %13 : vector<24x512xf32>
    %15 = math.exp %14 : vector<24x512xf32>
    %cst_12 = arith.constant 1.000000e+00 : f32
    %16 = vector.broadcast %cst_12 : f32 to vector<24x512xf32>
    %17 = arith.addf %16, %15 : vector<24x512xf32>
    %18 = arith.divf %16, %17 : vector<24x512xf32>
    %19 = vector.extract_strided_slice %18 {offsets = [0, 0], sizes = [24, 256], strides = [1, 1]} : vector<24x512xf32> to vector<24x256xf32>
    %20 = arith.mulf %19, %8 : vector<24x256xf32>
    %c0_13 = arith.constant 0 : index
    %c0_14 = arith.constant 0 : index
    %21 = vector.load %arg7[%c0_13, %c0_14] : memref<256x128xf32, #tpu.memory_space<vmem>>, vector<256x128xf32>
    %cst_15 = arith.constant dense<0.000000e+00> : vector<24x128xf32>
    %22 = tpu.matmul %20, %21, %cst_15 {dimension_numbers = #tpu.dot_dimension_numbers<[1], [0], [0], [1], [0, 0, 1, 1], [], []>} : vector<24x256xf32>, vector<256x128xf32>, vector<24x128xf32> -> vector<24x128xf32>
    %c0_16 = arith.constant 0 : index
    %c0_17 = arith.constant 0 : index
    %c0_18 = arith.constant 0 : index
    %c0_19 = arith.constant 0 : index
    %23 = vector.load %arg8[%c0_16, %c0_17, %c0_18, %c0_19] : memref<1x2x24x128xf32, #tpu.memory_space<vmem>>, vector<1x1x24x128xf32>
    %24 = vector.shape_cast %23 : vector<1x1x24x128xf32> to vector<24x128xf32>
    %25 = vector.shape_cast %22 : vector<24x128xf32> to vector<1x1x24x128xf32>
    tpu.vector_store %arg8[%c0_16, %c0_17, %c0_18, %c0_19], %25 {strides = array<i32>} : memref<1x2x24x128xf32, #tpu.memory_space<vmem>>, vector<1x1x24x128xf32>,
    %26 = vector.extract_strided_slice %18 {offsets = [0, 256], sizes = [24, 256], strides = [1, 1]} : vector<24x512xf32> to vector<24x256xf32>
    %27 = arith.mulf %26, %8 : vector<24x256xf32>
    %c0_20 = arith.constant 0 : index
    %c0_21 = arith.constant 0 : index
    %28 = vector.load %arg7[%c0_20, %c0_21] : memref<256x128xf32, #tpu.memory_space<vmem>>, vector<256x128xf32>
    %cst_22 = arith.constant dense<0.000000e+00> : vector<24x128xf32>
    %29 = tpu.matmul %27, %28, %cst_22 {dimension_numbers = #tpu.dot_dimension_numbers<[1], [0], [0], [1], [0, 0, 1, 1], [], []>} : vector<24x256xf32>, vector<256x128xf32>, vector<24x128xf32> -> vector<24x128xf32>
    %c0_23 = arith.constant 0 : index
    %c1 = arith.constant 1 : index
    %c0_24 = arith.constant 0 : index
    %c0_25 = arith.constant 0 : index
    %30 = vector.load %arg8[%c0_23, %c1, %c0_24, %c0_25] : memref<1x2x24x128xf32, #tpu.memory_space<vmem>>, vector<1x1x24x128xf32>
    %31 = vector.shape_cast %30 : vector<1x1x24x128xf32> to vector<24x128xf32>
    %32 = vector.shape_cast %29 : vector<24x128xf32> to vector<1x1x24x128xf32>
    tpu.vector_store %arg8[%c0_23, %c1, %c0_24, %c0_25], %32 {strides = array<i32>} : memref<1x2x24x128xf32, #tpu.memory_space<vmem>>, vector<1x1x24x128xf32>,
    return
  }
  func.func @transform_0(%arg0: i32, %arg1: i32) -> (i32, i32, i32) {
    %c0_i32 = arith.constant 0 : i32
    %c0_i32_0 = arith.constant 0 : i32
    return %arg0, %arg1, %c0_i32 : i32, i32, i32
  }
  func.func @transform_1(%arg0: i32, %arg1: i32) -> (i32, i32) {
    %c0_i32 = arith.constant 0 : i32
    %c0_i32_0 = arith.constant 0 : i32
    %c0_i32_1 = arith.constant 0 : i32
    return %c0_i32, %c0_i32_0 : i32, i32
  }
  func.func @transform_2(%arg0: i32, %arg1: i32) -> (i32, i32) {
    %c0_i32 = arith.constant 0 : i32
    %c0_i32_0 = arith.constant 0 : i32
    %c0_i32_1 = arith.constant 0 : i32
    return %c0_i32, %c0_i32_0 : i32, i32
  }
  func.func @transform_3(%arg0: i32, %arg1: i32) -> (i32, i32) {
    %c0_i32 = arith.constant 0 : i32
    %c0_i32_0 = arith.constant 0 : i32
    %c0_i32_1 = arith.constant 0 : i32
    return %c0_i32, %c0_i32_0 : i32, i32
  }
  func.func @transform_4(%arg0: i32, %arg1: i32) -> (i32, i32) {
    %c0_i32 = arith.constant 0 : i32
    %c0_i32_0 = arith.constant 0 : i32
    %c0_i32_1 = arith.constant 0 : i32
    return %c0_i32, %c0_i32_0 : i32, i32
  }
  func.func @transform_5(%arg0: i32, %arg1: i32) -> (i32, i32) {
    %c0_i32 = arith.constant 0 : i32
    %c0_i32_0 = arith.constant 0 : i32
    %c0_i32_1 = arith.constant 0 : i32
    return %c0_i32, %c0_i32_0 : i32, i32
  }
  func.func @transform_6(%arg0: i32, %arg1: i32) -> (i32, i32, i32, i32) {
    %c0_i32 = arith.constant 0 : i32
    %c0_i32_0 = arith.constant 0 : i32
    %c0_i32_1 = arith.constant 0 : i32
    return %arg0, %c0_i32, %arg1, %c0_i32_0 : i32, i32, i32, i32
  }
}

</mosaic_0001>

<llo_original>
// kernel: tpu_custom_call.1
$region0: #{tpu_custom_call.1}
  #allocation0 [shape = 'u32[]', space=smem, size = 0x4, offset = 0x4, fixed_abs, tag = 'smem constant byte address 0x4 - core index']
  #allocation1 [shape = 'u32[144,128]{1,0:T(1,128)}', space=vmem, size = 0x12000, scoped, tag = 'internal scratch']
  %s0 = inlined_call_operand.hbm [shape: f32[2,24,128], index: 0, kind: input, shape index: {}]
  %s1 = inlined_call_operand.hbm [shape: f32[128,256], index: 1, kind: input, shape index: {}]
  %s2 = inlined_call_operand.vmem [shape: f32[1,256], index: 2, kind: input, shape index: {}]
  %s3 = inlined_call_operand.hbm [shape: f32[256,512], index: 3, kind: input, shape index: {}]
  %s4 = inlined_call_operand.vmem [shape: f32[1,512], index: 4, kind: input, shape index: {}]
  %s5 = inlined_call_operand.hbm [shape: f32[256,128], index: 5, kind: input, shape index: {}]
  %s6 = inlined_call_operand.hbm [shape: f32[2,2,24,128], index: 6, kind: output, shape index: {}]
  %s7 = sld [smem:[#allocation0]]
  $region73: #{tpu_custom_call.1} parent=0
    _
  %s9 = ssub.s32 1, %s7
  %s10 = scalar_select 0, %s9, %s7
  $region1: #{tpu_custom_call.1} parent=0
    #allocation2 [shape = 'u8[24576]{0}', space=vmem, size = 0x6000, scoped, tag = 'input window, operand 0']
    #allocation3 [shape = 's32[2]{0}', space=sflag, size = 0x8, scoped, tag = 'scoped memory for tpu_custom_call.1']
    #allocation4 [shape = 's32[2]{0}', space=sflag, size = 0x8, scoped, tag = 'scoped memory for tpu_custom_call.1']
    #allocation5 [shape = 'u8[131072]{0}', space=vmem, size = 0x20000, scoped, tag = 'input window, operand 1, single buffered']
    #allocation6 [shape = 's32[1]{0}', space=sflag, size = 0x4, scoped, tag = 'scoped memory for tpu_custom_call.1']
    #allocation7 [shape = 'u8[524288]{0}', space=vmem, size = 0x80000, scoped, tag = 'input window, operand 3, single buffered']
    #allocation8 [shape = 'u8[131072]{0}', space=vmem, size = 0x20000, scoped, tag = 'input window, operand 5, single buffered']
    #allocation9 [shape = 's32[1]{0}', space=sflag, size = 0x4, scoped, tag = 'scoped memory for tpu_custom_call.1']
    #allocation10 [shape = 'u8[49152]{0}', space=vmem, size = 0xc000, scoped, tag = 'output window, operand 0']
    %11 = vsyncpa [#allocation3], 0
    %s12 = scalar_lea.sflag [#allocation3], 1
    %13 = vsyncpa %s12, 0
    %14 = vsyncpa [#allocation6], 0
    %15 = vsyncpa [#allocation9], 0
    %16 = vsyncpa [#allocation4], 0
    %s17 = scalar_lea.sflag [#allocation4], 1
    %18 = vsyncpa %s17, 0
    loop: start=0, step=1, limit=4
    $region2: #{tpu_custom_call.1} parent=1 // loop_pre_header
      _
    $region3: #{tpu_custom_call.1} parent=1 // loop_header
      %s20 = sphi 0, %s24
      %p21 = scmp.ge.s32.totalorder %s20, 4
      %s27 = sphi 0, %s39
      %s28 = sphi 0, %s35
      %s29 = sphi 0, %s27
      %s30 = sphi 0, %s28
      %s31 = sphi 0, %s29
      %s32 = sphi 0, %s30
      %s44 = sphi 0, %s46
      %s47 = sphi 0, %s44
      %s48 = sphi 0, %s47
      %s64 = sphi 0, %s48
      %s68 = sphi 0, %s68
      %s70 = sphi 0, %s68
      %s71 = sphi 0, %s70
      %s85 = sphi 0, %s71
      %s89 = sphi 0, %s89
      %s91 = sphi 0, %s89
      %s92 = sphi 0, %s91
      %s106 = sphi 0, %s92
      %s110 = sphi 0, %s110
      %s112 = sphi 0, %s110
      %s113 = sphi 0, %s112
      %s127 = sphi 0, %s113
      %s131 = sphi 0, %s131
      %s133 = sphi 0, %s131
      %s134 = sphi 0, %s133
      %s148 = sphi 0, %s134
      %s152 = sphi 0, %s152
      %s154 = sphi 0, %s152
      %s155 = sphi 0, %s154
      %s169 = sphi 0, %s155
      %s177 = sphi 0, %s179
      %s180 = sphi 0, %s177
      %s181 = sphi 0, %s180
      %s197 = sphi 0, %s181
    $region4: #{tpu_custom_call.1} parent=1 // loop_header_branch
      %23 = sbr.rel (%p21) target = $region8
    $region5: #{tpu_custom_call.1} parent=1 // loop_body
      %s25 = ssub.s32 %s20, 1
      %s26 = ssub.s32 %s20, 2
      %s33 = sadd.s32 1, %s28
      %p34 = scmp.ge.s32.totalorder %s33, 1
      %s35 = scalar_select %p34, 0, %s33
      %s36 = sadd.s32 1, %s27
      %s37 = scalar_select %p34, %s36, %s27
      %p38 = scmp.ge.s32.totalorder %s37, 2
      %s39 = scalar_select %p38, 0, %s37
      %s40 = ssub.s32 %s27, %s39
      %s41 = ssub.s32 %s28, %s35
      %s42 = sor.u32 %s40, %s41
      %p43 = scmp.eq.s32.totalorder %s42, 0
      %s45 = sadd.s32 %s44, 1
      %s46 = scalar_select %p43, %s44, %s45
      %p49 = pneg %p43
      %p50 = scmp.eq.s32.totalorder %s20, 1
      %p51 = por %p49, %p50
      %p52 = scmp.ne.s32.totalorder %s44, %s47
      %p53 = scmp.eq.s32.totalorder %s20, 0
      %p54 = por %p52, %p53
      %p55 = scmp.ne.s32.totalorder %s44, %s47
      %p56 = scmp.eq.s32.totalorder %s25, 1
      %p57 = por %p55, %p56
      %p58 = scmp.ne.s32.totalorder %s47, %s48
      %p59 = scmp.eq.s32.totalorder %s25, 0
      %p60 = por %p58, %p59
      %p61 = scmp.ne.s32.totalorder %s47, %s48
      %p62 = scmp.eq.s32.totalorder %s26, 1
      %p63 = por %p61, %p62
      %p65 = scmp.ne.s32.totalorder %s48, %s64
      %p66 = scmp.eq.s32.totalorder %s26, 0
      %p67 = por %p65, %p66
      %s69 = sadd.s32 %s68, 1
      %p72 = scmp.eq.s32.totalorder %s20, 1
      %p73 = scmp.ne.s32.totalorder %s68, %s70
      %p74 = scmp.eq.s32.totalorder %s20, 0
      %p75 = por %p73, %p74
      %p76 = scmp.ne.s32.totalorder %s68, %s70
      %p77 = scmp.eq.s32.totalorder %s25, 1
      %p78 = por %p76, %p77
      %p79 = scmp.ne.s32.totalorder %s70, %s71
      %p80 = scmp.eq.s32.totalorder %s25, 0
      %p81 = por %p79, %p80
      %p82 = scmp.ne.s32.totalorder %s70, %s71
      %p83 = scmp.eq.s32.totalorder %s26, 1
      %p84 = por %p82, %p83
      %p86 = scmp.ne.s32.totalorder %s71, %s85
      %p87 = scmp.eq.s32.totalorder %s26, 0
      %p88 = por %p86, %p87
      %s90 = sadd.s32 %s89, 1
      %p93 = scmp.eq.s32.totalorder %s20, 1
      %p94 = scmp.ne.s32.totalorder %s89, %s91
      %p95 = scmp.eq.s32.totalorder %s20, 0
      %p96 = por %p94, %p95
      %p97 = scmp.ne.s32.totalorder %s89, %s91
      %p98 = scmp.eq.s32.totalorder %s25, 1
      %p99 = por %p97, %p98
      %p100 = scmp.ne.s32.totalorder %s91, %s92
      %p101 = scmp.eq.s32.totalorder %s25, 0
      %p102 = por %p100, %p101
      %p103 = scmp.ne.s32.totalorder %s91, %s92
      %p104 = scmp.eq.s32.totalorder %s26, 1
      %p105 = por %p103, %p104
      %p107 = scmp.ne.s32.totalorder %s92, %s106
      %p108 = scmp.eq.s32.totalorder %s26, 0
      %p109 = por %p107, %p108
      %s111 = sadd.s32 %s110, 1
      %p114 = scmp.eq.s32.totalorder %s20, 1
      %p115 = scmp.ne.s32.totalorder %s110, %s112
      %p116 = scmp.eq.s32.totalorder %s20, 0
      %p117 = por %p115, %p116
      %p118 = scmp.ne.s32.totalorder %s110, %s112
      %p119 = scmp.eq.s32.totalorder %s25, 1
      %p120 = por %p118, %p119
      %p121 = scmp.ne.s32.totalorder %s112, %s113
      %p122 = scmp.eq.s32.totalorder %s25, 0
      %p123 = por %p121, %p122
      %p124 = scmp.ne.s32.totalorder %s112, %s113
      %p125 = scmp.eq.s32.totalorder %s26, 1
      %p126 = por %p124, %p125
      %p128 = scmp.ne.s32.totalorder %s113, %s127
      %p129 = scmp.eq.s32.totalorder %s26, 0
      %p130 = por %p128, %p129
      %s132 = sadd.s32 %s131, 1
      %p135 = scmp.eq.s32.totalorder %s20, 1
      %p136 = scmp.ne.s32.totalorder %s131, %s133
      %p137 = scmp.eq.s32.totalorder %s20, 0
      %p138 = por %p136, %p137
      %p139 = scmp.ne.s32.totalorder %s131, %s133
      %p140 = scmp.eq.s32.totalorder %s25, 1
      %p141 = por %p139, %p140
      %p142 = scmp.ne.s32.totalorder %s133, %s134
      %p143 = scmp.eq.s32.totalorder %s25, 0
      %p144 = por %p142, %p143
      %p145 = scmp.ne.s32.totalorder %s133, %s134
      %p146 = scmp.eq.s32.totalorder %s26, 1
      %p147 = por %p145, %p146
      %p149 = scmp.ne.s32.totalorder %s134, %s148
      %p150 = scmp.eq.s32.totalorder %s26, 0
      %p151 = por %p149, %p150
      %s153 = sadd.s32 %s152, 1
      %p156 = scmp.eq.s32.totalorder %s20, 1
      %p157 = scmp.ne.s32.totalorder %s152, %s154
      %p158 = scmp.eq.s32.totalorder %s20, 0
      %p159 = por %p157, %p158
      %p160 = scmp.ne.s32.totalorder %s152, %s154
      %p161 = scmp.eq.s32.totalorder %s25, 1
      %p162 = por %p160, %p161
      %p163 = scmp.ne.s32.totalorder %s154, %s155
      %p164 = scmp.eq.s32.totalorder %s25, 0
      %p165 = por %p163, %p164
      %p166 = scmp.ne.s32.totalorder %s154, %s155
      %p167 = scmp.eq.s32.totalorder %s26, 1
      %p168 = por %p166, %p167
      %p170 = scmp.ne.s32.totalorder %s155, %s169
      %p171 = scmp.eq.s32.totalorder %s26, 0
      %p172 = por %p170, %p171
      %s173 = ssub.s32 %s27, %s39
      %s174 = ssub.s32 %s28, %s35
      %s175 = sor.u32 %s173, %s174
      %p176 = scmp.eq.s32.totalorder %s175, 0
      %s178 = sadd.s32 %s177, 1
      %s179 = scalar_select %p176, %s177, %s178
      %p182 = pneg %p176
      %p183 = scmp.eq.s32.totalorder %s20, 1
      %p184 = por %p182, %p183
      %p185 = scmp.ne.s32.totalorder %s177, %s180
      %p186 = scmp.eq.s32.totalorder %s20, 0
      %p187 = por %p185, %p186
      %p188 = scmp.ne.s32.totalorder %s177, %s180
      %p189 = scmp.eq.s32.totalorder %s25, 1
      %p190 = por %p188, %p189
      %p191 = scmp.ne.s32.totalorder %s180, %s181
      %p192 = scmp.eq.s32.totalorder %s25, 0
      %p193 = por %p191, %p192
      %p194 = scmp.ne.s32.totalorder %s180, %s181
      %p195 = scmp.eq.s32.totalorder %s26, 1
      %p196 = por %p194, %p195
      %p198 = scmp.ne.s32.totalorder %s181, %s197
      %p199 = scmp.eq.s32.totalorder %s26, 0
      %p200 = por %p198, %p199
      %p201 = scmp.le.s32.totalorder 1, %s20
      %p202 = scmp.lt.s32.totalorder %s20, 3
      %p203 = pnand %p201, %p202
      %p204 = pneg %p203
      // Predicated region
      $region9: #{tpu_custom_call.1} parent=5 // pred_check
        _
      $region10: #{tpu_custom_call.1} parent=5 // pred_check_branch
        %206 = sbr.rel (%p203) target = $region12
      $region11: #{tpu_custom_call.1} parent=5 // pred_region
        %s207 = ssub.s32 %s20, 1
        // Predicated region
        $region13: #{tpu_custom_call.1} parent=11 // pred_check
          %p208 = pneg %p81
        $region14: #{tpu_custom_call.1} parent=11 // pred_check_branch
          %210 = sbr.rel (%p208) target = $region16
        $region15: #{tpu_custom_call.1} parent=11 // pred_region
          %s212 = ssub.s32 4096, 4096
          %213 = vsyncadd [#allocation6], %s212
          %s214 = sshll.u32 [#allocation5], 4
          %s215 = int_to_ptr.vmem [resolvable:$true] %s214
          %220 = dma.hbm_to_vmem [thread:$0]  %s1, 4096, %s215, [#allocation6], 256, 256, 16
        $region16: #{tpu_custom_call.1} parent=11 // pred_fallthru
          _
        // Predicated region
        $region17: #{tpu_custom_call.1} parent=11 // pred_check
          %p221 = pneg %p102
        $region18: #{tpu_custom_call.1} parent=11 // pred_check_branch
          %223 = sbr.rel (%p221) target = $region20
        $region19: #{tpu_custom_call.1} parent=11 // pred_region
          _
        $region20: #{tpu_custom_call.1} parent=11 // pred_fallthru
          _
        // Predicated region
        $region21: #{tpu_custom_call.1} parent=11 // pred_check
          %p224 = pneg %p123
        $region22: #{tpu_custom_call.1} parent=11 // pred_check_branch
          %226 = sbr.rel (%p224) target = $region24
        $region23: #{tpu_custom_call.1} parent=11 // pred_region
          %s228 = ssub.s32 16384, 16384
          %229 = vsyncadd [#allocation6], %s228
          %s230 = sshll.u32 [#allocation7], 4
          %s231 = int_to_ptr.vmem [resolvable:$true] %s230
          %236 = dma.hbm_to_vmem [thread:$0]  %s3, 16384, %s231, [#allocation6], 512, 512, 32
        $region24: #{tpu_custom_call.1} parent=11 // pred_fallthru
          _
        // Predicated region
        $region25: #{tpu_custom_call.1} parent=11 // pred_check
          %p237 = pneg %p144
        $region26: #{tpu_custom_call.1} parent=11 // pred_check_branch
          %239 = sbr.rel (%p237) target = $region28
        $region27: #{tpu_custom_call.1} parent=11 // pred_region
          _
        $region28: #{tpu_custom_call.1} parent=11 // pred_fallthru
          _
        // Predicated region
        $region29: #{tpu_custom_call.1} parent=11 // pred_check
          %p240 = pneg %p165
        $region30: #{tpu_custom_call.1} parent=11 // pred_check_branch
          %242 = sbr.rel (%p240) target = $region32
        $region31: #{tpu_custom_call.1} parent=11 // pred_region
          %s244 = ssub.s32 4096, 4096
          %245 = vsyncadd [#allocation9], %s244
          %s246 = sshll.u32 [#allocation8], 4
          %s247 = int_to_ptr.vmem [resolvable:$true] %s246
          %252 = dma.hbm_to_vmem [thread:$0]  %s5, 4096, %s247, [#allocation9], 128, 128, 8
        $region32: #{tpu_custom_call.1} parent=11 // pred_fallthru
          _
      $region12: #{tpu_custom_call.1} parent=5 // pred_fallthru
        _
      %p253 = scmp.lt.s32.totalorder %s20, 2
      // Predicated region
      $region33: #{tpu_custom_call.1} parent=5 // pred_check
        %p254 = pneg %p253
      $region34: #{tpu_custom_call.1} parent=5 // pred_check_branch
        %256 = sbr.rel (%p254) target = $region36
      $region35: #{tpu_custom_call.1} parent=5 // pred_region
        // Predicated region
        $region37: #{tpu_custom_call.1} parent=35 // pred_check
          %p257 = pneg %p54
        $region38: #{tpu_custom_call.1} parent=35 // pred_check_branch
          %259 = sbr.rel (%p257) target = $region40
        $region39: #{tpu_custom_call.1} parent=35 // pred_region
          %s260 = sand.u32 %s44, 1
          %s261 = scalar_lea.sflag [#allocation3], %s260
          %s262 = sand.u32 %s44, 1
          %s263 = smul.addr %s262, 24
          %s264 = scalar_lea.vmem [#allocation2], %s263
          %s265 = smul.u32 3, %s28
          %s267 = ssub.s32 384, 384
          %268 = vsyncadd %s261, %s267
          %s269 = smul.addr %s27, 3
          %s270 = sadd.s32 %s265, %s269
          %s271 = smul.addr %s270, 128
          %s272 = scalar_lea.hbm %s0, %s271
          %s273 = sshll.u32 %s264, 4
          %s274 = int_to_ptr.vmem [resolvable:$true] %s273
          %279 = dma.hbm_to_vmem [thread:$0]  %s272, 384, %s274, %s261, 128, 128, 8
        $region40: #{tpu_custom_call.1} parent=35 // pred_fallthru
          _
      $region36: #{tpu_custom_call.1} parent=5 // pred_fallthru
        _
      %p280 = scmp.le.s32.totalorder 1, %s20
      %p281 = scmp.lt.s32.totalorder %s20, 3
      %p282 = pnand %p280, %p281
      %p283 = pneg %p282
      // Predicated region
      $region41: #{tpu_custom_call.1} parent=5 // pred_check
        _
      $region42: #{tpu_custom_call.1} parent=5 // pred_check_branch
        %285 = sbr.rel (%p282) target = $region44
      $region43: #{tpu_custom_call.1} parent=5 // pred_region
        %s286 = ssub.s32 %s20, 1
        %s287 = sand.u32 %s47, 1
        %s288 = scalar_lea.sflag [#allocation3], %s287
        %s289 = sand.u32 %s47, 1
        %s290 = smul.addr %s289, 24
        %s291 = scalar_lea.vmem [#allocation2], %s290
        // Predicated region
        $region45: #{tpu_custom_call.1} parent=43 // pred_check
          %p292 = pneg %p60
        $region46: #{tpu_custom_call.1} parent=43 // pred_check_branch
          %294 = sbr.rel (%p292) target = $region48
        $region47: #{tpu_custom_call.1} parent=43 // pred_region
          %295 = dma.done %s288, 384
        $region48: #{tpu_custom_call.1} parent=43 // pred_fallthru
          _
        // Predicated region
        $region49: #{tpu_custom_call.1} parent=43 // pred_check
          %p296 = pneg %p81
        $region50: #{tpu_custom_call.1} parent=43 // pred_check_branch
          %298 = sbr.rel (%p296) target = $region52
        $region51: #{tpu_custom_call.1} parent=43 // pred_region
          %299 = dma.done [#allocation6], 4096
        $region52: #{tpu_custom_call.1} parent=43 // pred_fallthru
          _
        // Predicated region
        $region53: #{tpu_custom_call.1} parent=43 // pred_check
          %p300 = pneg %p123
        $region54: #{tpu_custom_call.1} parent=43 // pred_check_branch
          %302 = sbr.rel (%p300) target = $region56
        $region55: #{tpu_custom_call.1} parent=43 // pred_region
          %303 = dma.done [#allocation6], 16384
        $region56: #{tpu_custom_call.1} parent=43 // pred_fallthru
          _
        // Predicated region
        $region57: #{tpu_custom_call.1} parent=43 // pred_check
          %p304 = pneg %p165
        $region58: #{tpu_custom_call.1} parent=43 // pred_check_branch
          %306 = sbr.rel (%p304) target = $region60
        $region59: #{tpu_custom_call.1} parent=43 // pred_region
          %307 = dma.done [#allocation9], 4096
        $region60: #{tpu_custom_call.1} parent=43 // pred_fallthru
          _
        %s308 = sand.u32 %s47, 1
        %s309 = scalar_lea.sflag [#allocation3], %s308
        %s310 = sand.u32 %s47, 1
        %s311 = smul.addr %s310, 24
        %s312 = scalar_lea.vmem [#allocation2], %s311
        %p313 = pneg %p60
        %p314 = pneg %p57
        %p315 = pneg %p81
        %p316 = pneg %p78
        %p317 = pneg %p102
        %p318 = pneg %p99
        %p319 = pneg %p123
        %p320 = pneg %p120
        %p321 = pneg %p144
        %p322 = pneg %p141
        %p323 = pneg %p165
        %p324 = pneg %p162
        %p325 = pneg %p193
        %p326 = pneg %p190
        %s327 = sand.u32 %s180, 1
        %s328 = scalar_lea.sflag [#allocation4], %s327
        %s329 = sand.u32 %s180, 1
        %s330 = smul.addr %s329, 48
        %s331 = scalar_lea.vmem [#allocation10], %s330
        %s332 = smul.u32 3, %s30
        %s333 = smul.u32 3, %s30
        %v334 = vld [vmem:[%s291] sm:$0xff]
        %v335 = vld [vmem:[%s291 + $0x8] sm:$0xff]
        %v336 = vld [vmem:[%s291 + $0x10] sm:$0xff]
        %v337 = vld [vmem:[#allocation5] sm:$0xff]
        %v338 = vld [vmem:[#allocation5 + $0x8] sm:$0xff]
        %v339 = vld [vmem:[#allocation5 + $0x10] sm:$0xff]
        %v340 = vld [vmem:[#allocation5 + $0x18] sm:$0xff]
        %v341 = vld [vmem:[#allocation5 + $0x20] sm:$0xff]
        %v342 = vld [vmem:[#allocation5 + $0x28] sm:$0xff]
        %v343 = vld [vmem:[#allocation5 + $0x30] sm:$0xff]
        %v344 = vld [vmem:[#allocation5 + $0x38] sm:$0xff]
        %v345 = vld [vmem:[#allocation5 + $0x40] sm:$0xff]
        %v346 = vld [vmem:[#allocation5 + $0x48] sm:$0xff]
        %v347 = vld [vmem:[#allocation5 + $0x50] sm:$0xff]
        %v348 = vld [vmem:[#allocation5 + $0x58] sm:$0xff]
        %v349 = vld [vmem:[#allocation5 + $0x60] sm:$0xff]
        %v350 = vld [vmem:[#allocation5 + $0x68] sm:$0xff]
        %v351 = vld [vmem:[#allocation5 + $0x70] sm:$0xff]
        %v352 = vld [vmem:[#allocation5 + $0x78] sm:$0xff]
        %v353 = vld [vmem:[#allocation5 + $0x80] sm:$0xff]
        %v354 = vld [vmem:[#allocation5 + $0x88] sm:$0xff]
        %v355 = vld [vmem:[#allocation5 + $0x90] sm:$0xff]
        %v356 = vld [vmem:[#allocation5 + $0x98] sm:$0xff]
        %v357 = vld [vmem:[#allocation5 + $0xa0] sm:$0xff]
        %v358 = vld [vmem:[#allocation5 + $0xa8] sm:$0xff]
        %v359 = vld [vmem:[#allocation5 + $0xb0] sm:$0xff]
        %v360 = vld [vmem:[#allocation5 + $0xb8] sm:$0xff]
        %v361 = vld [vmem:[#allocation5 + $0xc0] sm:$0xff]
        %v362 = vld [vmem:[#allocation5 + $0xc8] sm:$0xff]
        %v363 = vld [vmem:[#allocation5 + $0xd0] sm:$0xff]
        %v364 = vld [vmem:[#allocation5 + $0xd8] sm:$0xff]
        %v365 = vld [vmem:[#allocation5 + $0xe0] sm:$0xff]
        %v366 = vld [vmem:[#allocation5 + $0xe8] sm:$0xff]
        %v367 = vld [vmem:[#allocation5 + $0xf0] sm:$0xff]
        %v368 = vld [vmem:[#allocation5 + $0xf8] sm:$0xff]
        %v369 = vld [vmem:[%s2] sm:$0x3]
        %v371 = vlaneseq
        %v372 = vshrl.u32 %v371, 7
        %v373 = vsub.s32 0, %v372
        %v374 = vrot.slane %v369, %v373
        %v375 = vlaneseq
        %v376 = vshrl.u32 %v375, 7
        %v377 = vsub.s32 1, %v376
        %v378 = vrot.slane %v369, %v377
        %381 = vmatprep.subr.mxu0 %v368
        %382 = vmatpush1.msra.mxu0 %v367
        %383 = vmatprep.subr.mxu0 %v366
        %384 = vmatpush1.msra.mxu0 %v365
        %385 = vmatprep.subr.mxu0 %v364
        %386 = vmatpush1.msra.mxu0 %v363
        %387 = vmatprep.subr.mxu0 %v362
        %388 = vmatpush1.msra.mxu0 %v361
        %389 = vmatprep.subr.mxu0 %v360
        %390 = vmatpush1.msra.mxu0 %v359
        %391 = vmatprep.subr.mxu0 %v358
        %392 = vmatpush1.msra.mxu0 %v357
        %393 = vmatprep.subr.mxu0 %v356
        %394 = vmatpush1.msra.mxu0 %v355
        %395 = vmatprep.subr.mxu0 %v354
        %396 = vmatpush1.msra.mxu0 %v353
        %397 = vmatprep.subr.mxu0 %v352
        %398 = vmatpush1.msra.mxu0 %v351
        %399 = vmatprep.subr.mxu0 %v350
        %400 = vmatpush1.msra.mxu0 %v349
        %401 = vmatprep.subr.mxu0 %v348
        %402 = vmatpush1.msra.mxu0 %v347
        %403 = vmatprep.subr.mxu0 %v346
        %404 = vmatpush1.msra.mxu0 %v345
        %405 = vmatprep.subr.mxu0 %v344
        %406 = vmatpush1.msra.mxu0 %v343
        %407 = vmatprep.subr.mxu0 %v342
        %408 = vmatpush1.msra.mxu0 %v341
        %409 = vmatprep.subr.mxu0 %v340
        %410 = vmatpush1.msra.mxu0 %v339
        %411 = vmatprep.subr.mxu0 %v338
        %412 = vmatpush1.msra.mxu0 %v337
        %413 = vmatprep.subr.mxu0 0.0
        %414 = vmatpush2.msra.mxu0 0.0
        %415 = vmatprep.subr.mxu0 0.0
        %416 = vmatpush2.msra.mxu0 0.0
        %417 = vmatprep.subr.mxu0 0.0
        %418 = vmatpush2.msra.mxu0 0.0
        %419 = vmatprep.subr.mxu0 0.0
        %420 = vmatpush2.msra.mxu0 0.0
        %421 = vmatprep.subr.mxu0 0.0
        %422 = vmatpush2.msra.mxu0 0.0
        %423 = vmatprep.subr.mxu0 0.0
        %424 = vmatpush2.msra.mxu0 0.0
        %425 = vmatprep.subr.mxu0 0.0
        %426 = vmatpush2.msra.mxu0 0.0
        %427 = vmatprep.subr.mxu0 0.0
        %428 = vmatpush2.msra.mxu0 0.0
        %429 = vmatprep.subr.mxu0 0.0
        %430 = vmatpush2.msra.mxu0 0.0
        %431 = vmatprep.subr.mxu0 0.0
        %432 = vmatpush2.msra.mxu0 0.0
        %433 = vmatprep.subr.mxu0 0.0
        %434 = vmatpush2.msra.mxu0 0.0
        %435 = vmatprep.subr.mxu0 0.0
        %436 = vmatpush2.msra.mxu0 0.0
        %437 = vmatprep.subr.mxu0 0.0
        %438 = vmatpush2.msra.mxu0 0.0
        %439 = vmatprep.subr.mxu0 0.0
        %440 = vmatpush2.msra.mxu0 0.0
        %441 = vmatprep.subr.mxu0 0.0
        %442 = vmatpush2.msra.mxu0 0.0
        %443 = vmatprep.subr.mxu0 0.0
        %444 = vmatpush2.msra.mxu0 0.0
        %445 = vmatprep.mubr.f32.mxu0 0.0
        %446 = vmatmul.mubr.f32.gmra.mxu0 %v334
        %v447 = vpop.f32.mrf.mxu0
        %v448 = vadd.f32 %v374, %v447
        %v449 = vpop.f32.mrf.mxu0
        %v450 = vadd.f32 %v378, %v449
        %451 = vmatprep.mubr.f32.mxu0 0.0
        %452 = vmatmul.mubr.f32.gmra.mxu0 %v335
        %v453 = vpop.f32.mrf.mxu0
        %v454 = vadd.f32 %v374, %v453
        %v455 = vpop.f32.mrf.mxu0
        %v456 = vadd.f32 %v378, %v455
        %457 = vmatprep.mubr.f32.mxu0 0.0
        %458 = vmatmul.mubr.f32.gmra.mxu0 %v336
        %v459 = vpop.f32.mrf.mxu0
        %v460 = vadd.f32 %v374, %v459
        %v461 = vpop.f32.mrf.mxu0
        %v462 = vadd.f32 %v378, %v461
        %463 = vdwg.mxu0
        %v464 = vmax.f32 %v448, 0.0
        %v465 = vmax.f32 %v450, 0.0
        %v466 = vmax.f32 %v454, 0.0
        %v467 = vmax.f32 %v456, 0.0
        %v468 = vmax.f32 %v460, 0.0
        %v469 = vmax.f32 %v462, 0.0
        %v470 = vld [vmem:[#allocation7] sm:$0xff]
        %v471 = vld [vmem:[#allocation7 + $0x8] sm:$0xff]
        %v472 = vld [vmem:[#allocation7 + $0x10] sm:$0xff]
        %v473 = vld [vmem:[#allocation7 + $0x18] sm:$0xff]
        %v474 = vld [vmem:[#allocation7 + $0x20] sm:$0xff]
        %v475 = vld [vmem:[#allocation7 + $0x28] sm:$0xff]
        %v476 = vld [vmem:[#allocation7 + $0x30] sm:$0xff]
        %v477 = vld [vmem:[#allocation7 + $0x38] sm:$0xff]
        %v478 = vld [vmem:[#allocation7 + $0x40] sm:$0xff]
        %v479 = vld [vmem:[#allocation7 + $0x48] sm:$0xff]
        %v480 = vld [vmem:[#allocation7 + $0x50] sm:$0xff]
        %v481 = vld [vmem:[#allocation7 + $0x58] sm:$0xff]
        %v482 = vld [vmem:[#allocation7 + $0x60] sm:$0xff]
        %v483 = vld [vmem:[#allocation7 + $0x68] sm:$0xff]
        %v484 = vld [vmem:[#allocation7 + $0x70] sm:$0xff]
        %v485 = vld [vmem:[#allocation7 + $0x78] sm:$0xff]
        %v486 = vld [vmem:[#allocation7 + $0x80] sm:$0xff]
        %v487 = vld [vmem:[#allocation7 + $0x88] sm:$0xff]
        %v488 = vld [vmem:[#allocation7 + $0x90] sm:$0xff]
        %v489 = vld [vmem:[#allocation7 + $0x98] sm:$0xff]
        %v490 = vld [vmem:[#allocation7 + $0xa0] sm:$0xff]
        %v491 = vld [vmem:[#allocation7 + $0xa8] sm:$0xff]
        %v492 = vld [vmem:[#allocation7 + $0xb0] sm:$0xff]
        %v493 = vld [vmem:[#allocation7 + $0xb8] sm:$0xff]
        %v494 = vld [vmem:[#allocation7 + $0xc0] sm:$0xff]
        %v495 = vld [vmem:[#allocation7 + $0xc8] sm:$0xff]
        %v496 = vld [vmem:[#allocation7 + $0xd0] sm:$0xff]
        %v497 = vld [vmem:[#allocation7 + $0xd8] sm:$0xff]
        %v498 = vld [vmem:[#allocation7 + $0xe0] sm:$0xff]
        %v499 = vld [vmem:[#allocation7 + $0xe8] sm:$0xff]
        %v500 = vld [vmem:[#allocation7 + $0xf0] sm:$0xff]
        %v501 = vld [vmem:[#allocation7 + $0xf8] sm:$0xff]
        %v502 = vld [vmem:[#allocation7 + $0x100] sm:$0xff]
        %v503 = vld [vmem:[#allocation7 + $0x108] sm:$0xff]
        %v504 = vld [vmem:[#allocation7 + $0x110] sm:$0xff]
        %v505 = vld [vmem:[#allocation7 + $0x118] sm:$0xff]
        %v506 = vld [vmem:[#allocation7 + $0x120] sm:$0xff]
        %v507 = vld [vmem:[#allocation7 + $0x128] sm:$0xff]
        %v508 = vld [vmem:[#allocation7 + $0x130] sm:$0xff]
        %v509 = vld [vmem:[#allocation7 + $0x138] sm:$0xff]
        %v510 = vld [vmem:[#allocation7 + $0x140] sm:$0xff]
        %v511 = vld [vmem:[#allocation7 + $0x148] sm:$0xff]
        %v512 = vld [vmem:[#allocation7 + $0x150] sm:$0xff]
        %v513 = vld [vmem:[#allocation7 + $0x158] sm:$0xff]
        %v514 = vld [vmem:[#allocation7 + $0x160] sm:$0xff]
        %v515 = vld [vmem:[#allocation7 + $0x168] sm:$0xff]
        %v516 = vld [vmem:[#allocation7 + $0x170] sm:$0xff]
        %v517 = vld [vmem:[#allocation7 + $0x178] sm:$0xff]
        %v518 = vld [vmem:[#allocation7 + $0x180] sm:$0xff]
        %v519 = vld [vmem:[#allocation7 + $0x188] sm:$0xff]
        %v520 = vld [vmem:[#allocation7 + $0x190] sm:$0xff]
        %v521 = vld [vmem:[#allocation7 + $0x198] sm:$0xff]
        %v522 = vld [vmem:[#allocation7 + $0x1a0] sm:$0xff]
        %v523 = vld [vmem:[#allocation7 + $0x1a8] sm:$0xff]
        %v524 = vld [vmem:[#allocation7 + $0x1b0] sm:$0xff]
        %v525 = vld [vmem:[#allocation7 + $0x1b8] sm:$0xff]
        %v526 = vld [vmem:[#allocation7 + $0x1c0] sm:$0xff]
        %v527 = vld [vmem:[#allocation7 + $0x1c8] sm:$0xff]
        %v528 = vld [vmem:[#allocation7 + $0x1d0] sm:$0xff]
        %v529 = vld [vmem:[#allocation7 + $0x1d8] sm:$0xff]
        %v530 = vld [vmem:[#allocation7 + $0x1e0] sm:$0xff]
        %v531 = vld [vmem:[#allocation7 + $0x1e8] sm:$0xff]
        %v532 = vld [vmem:[#allocation7 + $0x1f0] sm:$0xff]
        %v533 = vld [vmem:[#allocation7 + $0x1f8] sm:$0xff]
        %v534 = vld [vmem:[#allocation7 + $0x200] sm:$0xff]
        %v535 = vld [vmem:[#allocation7 + $0x208] sm:$0xff]
        %v536 = vld [vmem:[#allocation7 + $0x210] sm:$0xff]
        %v537 = vld [vmem:[#allocation7 + $0x218] sm:$0xff]
        %v538 = vld [vmem:[#allocation7 + $0x220] sm:$0xff]
        %v539 = vld [vmem:[#allocation7 + $0x228] sm:$0xff]
        %v540 = vld [vmem:[#allocation7 + $0x230] sm:$0xff]
        %v541 = vld [vmem:[#allocation7 + $0x238] sm:$0xff]
        %v542 = vld [vmem:[#allocation7 + $0x240] sm:$0xff]
        %v543 = vld [vmem:[#allocation7 + $0x248] sm:$0xff]
        %v544 = vld [vmem:[#allocation7 + $0x250] sm:$0xff]
        %v545 = vld [vmem:[#allocation7 + $0x258] sm:$0xff]
        %v546 = vld [vmem:[#allocation7 + $0x260] sm:$0xff]
        %v547 = vld [vmem:[#allocation7 + $0x268] sm:$0xff]
        %v548 = vld [vmem:[#allocation7 + $0x270] sm:$0xff]
        %v549 = vld [vmem:[#allocation7 + $0x278] sm:$0xff]
        %v550 = vld [vmem:[#allocation7 + $0x280] sm:$0xff]
        %v551 = vld [vmem:[#allocation7 + $0x288] sm:$0xff]
        %v552 = vld [vmem:[#allocation7 + $0x290] sm:$0xff]
        %v553 = vld [vmem:[#allocation7 + $0x298] sm:$0xff]
        %v554 = vld [vmem:[#allocation7 + $0x2a0] sm:$0xff]
        %v555 = vld [vmem:[#allocation7 + $0x2a8] sm:$0xff]
        %v556 = vld [vmem:[#allocation7 + $0x2b0] sm:$0xff]
        %v557 = vld [vmem:[#allocation7 + $0x2b8] sm:$0xff]
        %v558 = vld [vmem:[#allocation7 + $0x2c0] sm:$0xff]
        %v559 = vld [vmem:[#allocation7 + $0x2c8] sm:$0xff]
        %v560 = vld [vmem:[#allocation7 + $0x2d0] sm:$0xff]
        %v561 = vld [vmem:[#allocation7 + $0x2d8] sm:$0xff]
        %v562 = vld [vmem:[#allocation7 + $0x2e0] sm:$0xff]
        %v563 = vld [vmem:[#allocation7 + $0x2e8] sm:$0xff]
        %v564 = vld [vmem:[#allocation7 + $0x2f0] sm:$0xff]
        %v565 = vld [vmem:[#allocation7 + $0x2f8] sm:$0xff]
        %v566 = vld [vmem:[#allocation7 + $0x300] sm:$0xff]
        %v567 = vld [vmem:[#allocation7 + $0x308] sm:$0xff]
        %v568 = vld [vmem:[#allocation7 + $0x310] sm:$0xff]
        %v569 = vld [vmem:[#allocation7 + $0x318] sm:$0xff]
        %v570 = vld [vmem:[#allocation7 + $0x320] sm:$0xff]
        %v571 = vld [vmem:[#allocation7 + $0x328] sm:$0xff]
        %v572 = vld [vmem:[#allocation7 + $0x330] sm:$0xff]
        %v573 = vld [vmem:[#allocation7 + $0x338] sm:$0xff]
        %v574 = vld [vmem:[#allocation7 + $0x340] sm:$0xff]
        %v575 = vld [vmem:[#allocation7 + $0x348] sm:$0xff]
        %v576 = vld [vmem:[#allocation7 + $0x350] sm:$0xff]
        %v577 = vld [vmem:[#allocation7 + $0x358] sm:$0xff]
        %v578 = vld [vmem:[#allocation7 + $0x360] sm:$0xff]
        %v579 = vld [vmem:[#allocation7 + $0x368] sm:$0xff]
        %v580 = vld [vmem:[#allocation7 + $0x370] sm:$0xff]
        %v581 = vld [vmem:[#allocation7 + $0x378] sm:$0xff]
        %v582 = vld [vmem:[#allocation7 + $0x380] sm:$0xff]
        %v583 = vld [vmem:[#allocation7 + $0x388] sm:$0xff]
        %v584 = vld [vmem:[#allocation7 + $0x390] sm:$0xff]
        %v585 = vld [vmem:[#allocation7 + $0x398] sm:$0xff]
        %v586 = vld [vmem:[#allocation7 + $0x3a0] sm:$0xff]
        %v587 = vld [vmem:[#allocation7 + $0x3a8] sm:$0xff]
        %v588 = vld [vmem:[#allocation7 + $0x3b0] sm:$0xff]
        %v589 = vld [vmem:[#allocation7 + $0x3b8] sm:$0xff]
        %v590 = vld [vmem:[#allocation7 + $0x3c0] sm:$0xff]
        %v591 = vld [vmem:[#allocation7 + $0x3c8] sm:$0xff]
        %v592 = vld [vmem:[#allocation7 + $0x3d0] sm:$0xff]
        %v593 = vld [vmem:[#allocation7 + $0x3d8] sm:$0xff]
        %v594 = vld [vmem:[#allocation7 + $0x3e0] sm:$0xff]
        %v595 = vld [vmem:[#allocation7 + $0x3e8] sm:$0xff]
        %v596 = vld [vmem:[#allocation7 + $0x3f0] sm:$0xff]
        %v597 = vld [vmem:[#allocation7 + $0x3f8] sm:$0xff]
        %v598 = vld [vmem:[%s4] sm:$0xf]
        %v600 = vlaneseq
        %v601 = vshrl.u32 %v600, 7
        %v602 = vsub.s32 0, %v601
        %v603 = vrot.slane %v598, %v602
        %v604 = vlaneseq
        %v605 = vshrl.u32 %v604, 7
        %v606 = vsub.s32 1, %v605
        %v607 = vrot.slane %v598, %v606
        %v608 = vlaneseq
        %v609 = vshrl.u32 %v608, 7
        %v610 = vsub.s32 2, %v609
        %v611 = vrot.slane %v598, %v610
        %v612 = vlaneseq
        %v613 = vshrl.u32 %v612, 7
        %v614 = vsub.s32 3, %v613
        %v615 = vrot.slane %v598, %v614
        %620 = vmatprep.subr.mxu0 %v531
        %621 = vmatpush1.msra.mxu0 %v530
        %622 = vmatprep.subr.mxu0 %v527
        %623 = vmatpush1.msra.mxu0 %v526
        %624 = vmatprep.subr.mxu0 %v523
        %625 = vmatpush1.msra.mxu0 %v522
        %626 = vmatprep.subr.mxu0 %v519
        %627 = vmatpush1.msra.mxu0 %v518
        %628 = vmatprep.subr.mxu0 %v515
        %629 = vmatpush1.msra.mxu0 %v514
        %630 = vmatprep.subr.mxu0 %v511
        %631 = vmatpush1.msra.mxu0 %v510
        %632 = vmatprep.subr.mxu0 %v507
        %633 = vmatpush1.msra.mxu0 %v506
        %634 = vmatprep.subr.mxu0 %v503
        %635 = vmatpush1.msra.mxu0 %v502
        %636 = vmatprep.subr.mxu0 %v499
        %637 = vmatpush1.msra.mxu0 %v498
        %638 = vmatprep.subr.mxu0 %v495
        %639 = vmatpush1.msra.mxu0 %v494
        %640 = vmatprep.subr.mxu0 %v491
        %641 = vmatpush1.msra.mxu0 %v490
        %642 = vmatprep.subr.mxu0 %v487
        %643 = vmatpush1.msra.mxu0 %v486
        %644 = vmatprep.subr.mxu0 %v483
        %645 = vmatpush1.msra.mxu0 %v482
        %646 = vmatprep.subr.mxu0 %v479
        %647 = vmatpush1.msra.mxu0 %v478
        %648 = vmatprep.subr.mxu0 %v475
        %649 = vmatpush1.msra.mxu0 %v474
        %650 = vmatprep.subr.mxu0 %v471
        %651 = vmatpush1.msra.mxu0 %v470
        %652 = vmatprep.subr.mxu0 %v595
        %653 = vmatpush2.msra.mxu0 %v594
        %654 = vmatprep.subr.mxu0 %v591
        %655 = vmatpush2.msra.mxu0 %v590
        %656 = vmatprep.subr.mxu0 %v587
        %657 = vmatpush2.msra.mxu0 %v586
        %658 = vmatprep.subr.mxu0 %v583
        %659 = vmatpush2.msra.mxu0 %v582
        %660 = vmatprep.subr.mxu0 %v579
        %661 = vmatpush2.msra.mxu0 %v578
        %662 = vmatprep.subr.mxu0 %v575
        %663 = vmatpush2.msra.mxu0 %v574
        %664 = vmatprep.subr.mxu0 %v571
        %665 = vmatpush2.msra.mxu0 %v570
        %666 = vmatprep.subr.mxu0 %v567
        %667 = vmatpush2.msra.mxu0 %v566
        %668 = vmatprep.subr.mxu0 %v563
        %669 = vmatpush2.msra.mxu0 %v562
        %670 = vmatprep.subr.mxu0 %v559
        %671 = vmatpush2.msra.mxu0 %v558
        %672 = vmatprep.subr.mxu0 %v555
        %673 = vmatpush2.msra.mxu0 %v554
        %674 = vmatprep.subr.mxu0 %v551
        %675 = vmatpush2.msra.mxu0 %v550
        %676 = vmatprep.subr.mxu0 %v547
        %677 = vmatpush2.msra.mxu0 %v546
        %678 = vmatprep.subr.mxu0 %v543
        %679 = vmatpush2.msra.mxu0 %v542
        %680 = vmatprep.subr.mxu0 %v539
        %681 = vmatpush2.msra.mxu0 %v538
        %682 = vmatprep.subr.mxu0 %v535
        %683 = vmatpush2.msra.mxu0 %v534
        %684 = vmatprep.mubr.f32.mxu0 %v465
        %685 = vmatmul.mubr.f32.gmra.mxu0 %v464
        %v686 = vpop.f32.mrf.mxu0
        %v687 = vadd.f32 %v603, %v686
        %v688 = vpop.f32.mrf.mxu0
        %v689 = vadd.f32 %v607, %v688
        %690 = vmatprep.mubr.f32.mxu0 %v467
        %691 = vmatmul.mubr.f32.gmra.mxu0 %v466
        %v692 = vpop.f32.mrf.mxu0
        %v693 = vadd.f32 %v603, %v692
        %v694 = vpop.f32.mrf.mxu0
        %v695 = vadd.f32 %v607, %v694
        %696 = vmatprep.mubr.f32.mxu0 %v469
        %697 = vmatmul.mubr.f32.gmra.mxu0 %v468
        %v698 = vpop.f32.mrf.mxu0
        %v699 = vadd.f32 %v603, %v698
        %v700 = vpop.f32.mrf.mxu0
        %v701 = vadd.f32 %v607, %v700
        %702 = vdwg.mxu0
        %703 = vmatprep.subr.mxu0 %v533
        %704 = vmatpush1.msra.mxu0 %v532
        %705 = vmatprep.subr.mxu0 %v529
        %706 = vmatpush1.msra.mxu0 %v528
        %707 = vmatprep.subr.mxu0 %v525
        %708 = vmatpush1.msra.mxu0 %v524
        %709 = vmatprep.subr.mxu0 %v521
        %710 = vmatpush1.msra.mxu0 %v520
        %711 = vmatprep.subr.mxu0 %v517
        %712 = vmatpush1.msra.mxu0 %v516
        %713 = vmatprep.subr.mxu0 %v513
        %714 = vmatpush1.msra.mxu0 %v512
        %715 = vmatprep.subr.mxu0 %v509
        %716 = vmatpush1.msra.mxu0 %v508
        %717 = vmatprep.subr.mxu0 %v505
        %718 = vmatpush1.msra.mxu0 %v504
        %719 = vmatprep.subr.mxu0 %v501
        %720 = vmatpush1.msra.mxu0 %v500
        %721 = vmatprep.subr.mxu0 %v497
        %722 = vmatpush1.msra.mxu0 %v496
        %723 = vmatprep.subr.mxu0 %v493
        %724 = vmatpush1.msra.mxu0 %v492
        %725 = vmatprep.subr.mxu0 %v489
        %726 = vmatpush1.msra.mxu0 %v488
        %727 = vmatprep.subr.mxu0 %v485
        %728 = vmatpush1.msra.mxu0 %v484
        %729 = vmatprep.subr.mxu0 %v481
        %730 = vmatpush1.msra.mxu0 %v480
        %731 = vmatprep.subr.mxu0 %v477
        %732 = vmatpush1.msra.mxu0 %v476
        %733 = vmatprep.subr.mxu0 %v473
        %734 = vmatpush1.msra.mxu0 %v472
        %735 = vmatprep.subr.mxu0 %v597
        %736 = vmatpush2.msra.mxu0 %v596
        %737 = vmatprep.subr.mxu0 %v593
        %738 = vmatpush2.msra.mxu0 %v592
        %739 = vmatprep.subr.mxu0 %v589
        %740 = vmatpush2.msra.mxu0 %v588
        %741 = vmatprep.subr.mxu0 %v585
        %742 = vmatpush2.msra.mxu0 %v584
        %743 = vmatprep.subr.mxu0 %v581
        %744 = vmatpush2.msra.mxu0 %v580
        %745 = vmatprep.subr.mxu0 %v577
        %746 = vmatpush2.msra.mxu0 %v576
        %747 = vmatprep.subr.mxu0 %v573
        %748 = vmatpush2.msra.mxu0 %v572
        %749 = vmatprep.subr.mxu0 %v569
        %750 = vmatpush2.msra.mxu0 %v568
        %751 = vmatprep.subr.mxu0 %v565
        %752 = vmatpush2.msra.mxu0 %v564
        %753 = vmatprep.subr.mxu0 %v561
        %754 = vmatpush2.msra.mxu0 %v560
        %755 = vmatprep.subr.mxu0 %v557
        %756 = vmatpush2.msra.mxu0 %v556
        %757 = vmatprep.subr.mxu0 %v553
        %758 = vmatpush2.msra.mxu0 %v552
        %759 = vmatprep.subr.mxu0 %v549
        %760 = vmatpush2.msra.mxu0 %v548
        %761 = vmatprep.subr.mxu0 %v545
        %762 = vmatpush2.msra.mxu0 %v544
        %763 = vmatprep.subr.mxu0 %v541
        %764 = vmatpush2.msra.mxu0 %v540
        %765 = vmatprep.subr.mxu0 %v537
        %766 = vmatpush2.msra.mxu0 %v536
        %767 = vmatprep.mubr.f32.mxu0 %v465
        %768 = vmatmul.mubr.f32.gmra.mxu0 %v464
        %v769 = vpop.f32.mrf.mxu0
        %v770 = vadd.f32 %v611, %v769
        %v771 = vpop.f32.mrf.mxu0
        %v772 = vadd.f32 %v615, %v771
        %773 = vmatprep.mubr.f32.mxu0 %v467
        %774 = vmatmul.mubr.f32.gmra.mxu0 %v466
        %v775 = vpop.f32.mrf.mxu0
        %v776 = vadd.f32 %v611, %v775
        %v777 = vpop.f32.mrf.mxu0
        %v778 = vadd.f32 %v615, %v777
        %779 = vmatprep.mubr.f32.mxu0 %v469
        %780 = vmatmul.mubr.f32.gmra.mxu0 %v468
        %v781 = vpop.f32.mrf.mxu0
        %v782 = vadd.f32 %v611, %v781
        %v783 = vpop.f32.mrf.mxu0
        %v784 = vadd.f32 %v615, %v783
        %785 = vdwg.mxu0
        %v786 = vxor.u32 %v687, 2147483648
        %v787 = vxor.u32 %v689, 2147483648
        %v788 = vxor.u32 %v770, 2147483648
        %v789 = vxor.u32 %v772, 2147483648
        %v790 = vxor.u32 %v693, 2147483648
        %v791 = vxor.u32 %v695, 2147483648
        %v792 = vxor.u32 %v776, 2147483648
        %v793 = vxor.u32 %v778, 2147483648
        %v794 = vxor.u32 %v699, 2147483648
        %v795 = vxor.u32 %v701, 2147483648
        %v796 = vxor.u32 %v782, 2147483648
        %v797 = vxor.u32 %v784, 2147483648
        %v798 = vmul.f32 %v786, 1.442695
        %v799 = vpow.pop %v798
        %v800 = vmul.f32 %v787, 1.442695
        %v801 = vpow.pop %v800
        %v802 = vmul.f32 %v788, 1.442695
        %v803 = vpow.pop %v802
        %v804 = vmul.f32 %v789, 1.442695
        %v805 = vpow.pop %v804
        %v806 = vmul.f32 %v790, 1.442695
        %v807 = vpow.pop %v806
        %v808 = vmul.f32 %v791, 1.442695
        %v809 = vpow.pop %v808
        %v810 = vmul.f32 %v792, 1.442695
        %v811 = vpow.pop %v810
        %v812 = vmul.f32 %v793, 1.442695
        %v813 = vpow.pop %v812
        %v814 = vmul.f32 %v794, 1.442695
        %v815 = vpow.pop %v814
        %v816 = vmul.f32 %v795, 1.442695
        %v817 = vpow.pop %v816
        %v818 = vmul.f32 %v796, 1.442695
        %v819 = vpow.pop %v818
        %v820 = vmul.f32 %v797, 1.442695
        %v821 = vpow.pop %v820
        %v822 = vadd.f32 %v799, 1.0
        %v823 = vadd.f32 %v801, 1.0
        %v824 = vadd.f32 %v803, 1.0
        %v825 = vadd.f32 %v805, 1.0
        %v826 = vadd.f32 %v807, 1.0
        %v827 = vadd.f32 %v809, 1.0
        %v828 = vadd.f32 %v811, 1.0
        %v829 = vadd.f32 %v813, 1.0
        %v830 = vadd.f32 %v815, 1.0
        %v831 = vadd.f32 %v817, 1.0
        %v832 = vadd.f32 %v819, 1.0
        %v833 = vadd.f32 %v821, 1.0
        %v834 = vrcp.pop %v822
        %v835 = vmul.f32 1.0, %v834
        %v836 = vrcp.pop %v823
        %v837 = vmul.f32 1.0, %v836
        %v838 = vrcp.pop %v824
        %v839 = vmul.f32 1.0, %v838
        %v840 = vrcp.pop %v825
        %v841 = vmul.f32 1.0, %v840
        %v842 = vrcp.pop %v826
        %v843 = vmul.f32 1.0, %v842
        %v844 = vrcp.pop %v827
        %v845 = vmul.f32 1.0, %v844
        %v846 = vrcp.pop %v828
        %v847 = vmul.f32 1.0, %v846
        %v848 = vrcp.pop %v829
        %v849 = vmul.f32 1.0, %v848
        %v850 = vrcp.pop %v830
        %v851 = vmul.f32 1.0, %v850
        %v852 = vrcp.pop %v831
        %v853 = vmul.f32 1.0, %v852
        %v854 = vrcp.pop %v832
        %v855 = vmul.f32 1.0, %v854
        %v856 = vrcp.pop %v833
        %v857 = vmul.f32 1.0, %v856
        %v858 = vmul.f32 %v835, %v464
        %v859 = vmul.f32 %v837, %v465
        %v860 = vmul.f32 %v843, %v466
        %v861 = vmul.f32 %v845, %v467
        %v862 = vmul.f32 %v851, %v468
        %v863 = vmul.f32 %v853, %v469
        %v864 = vld [vmem:[#allocation8] sm:$0xff]
        %v865 = vld [vmem:[#allocation8 + $0x8] sm:$0xff]
        %v866 = vld [vmem:[#allocation8 + $0x10] sm:$0xff]
        %v867 = vld [vmem:[#allocation8 + $0x18] sm:$0xff]
        %v868 = vld [vmem:[#allocation8 + $0x20] sm:$0xff]
        %v869 = vld [vmem:[#allocation8 + $0x28] sm:$0xff]
        %v870 = vld [vmem:[#allocation8 + $0x30] sm:$0xff]
        %v871 = vld [vmem:[#allocation8 + $0x38] sm:$0xff]
        %v872 = vld [vmem:[#allocation8 + $0x40] sm:$0xff]
        %v873 = vld [vmem:[#allocation8 + $0x48] sm:$0xff]
        %v874 = vld [vmem:[#allocation8 + $0x50] sm:$0xff]
        %v875 = vld [vmem:[#allocation8 + $0x58] sm:$0xff]
        %v876 = vld [vmem:[#allocation8 + $0x60] sm:$0xff]
        %v877 = vld [vmem:[#allocation8 + $0x68] sm:$0xff]
        %v878 = vld [vmem:[#allocation8 + $0x70] sm:$0xff]
        %v879 = vld [vmem:[#allocation8 + $0x78] sm:$0xff]
        %v880 = vld [vmem:[#allocation8 + $0x80] sm:$0xff]
        %v881 = vld [vmem:[#allocation8 + $0x88] sm:$0xff]
        %v882 = vld [vmem:[#allocation8 + $0x90] sm:$0xff]
        %v883 = vld [vmem:[#allocation8 + $0x98] sm:$0xff]
        %v884 = vld [vmem:[#allocation8 + $0xa0] sm:$0xff]
        %v885 = vld [vmem:[#allocation8 + $0xa8] sm:$0xff]
        %v886 = vld [vmem:[#allocation8 + $0xb0] sm:$0xff]
        %v887 = vld [vmem:[#allocation8 + $0xb8] sm:$0xff]
        %v888 = vld [vmem:[#allocation8 + $0xc0] sm:$0xff]
        %v889 = vld [vmem:[#allocation8 + $0xc8] sm:$0xff]
        %v890 = vld [vmem:[#allocation8 + $0xd0] sm:$0xff]
        %v891 = vld [vmem:[#allocation8 + $0xd8] sm:$0xff]
        %v892 = vld [vmem:[#allocation8 + $0xe0] sm:$0xff]
        %v893 = vld [vmem:[#allocation8 + $0xe8] sm:$0xff]
        %v894 = vld [vmem:[#allocation8 + $0xf0] sm:$0xff]
        %v895 = vld [vmem:[#allocation8 + $0xf8] sm:$0xff]
        %896 = vmatprep.subr.mxu0 0.0
        %897 = vmatpush1.msra.mxu0 %v879
        %898 = vmatprep.subr.mxu0 0.0
        %899 = vmatpush1.msra.mxu0 %v878
        %900 = vmatprep.subr.mxu0 0.0
        %901 = vmatpush1.msra.mxu0 %v877
        %902 = vmatprep.subr.mxu0 0.0
        %903 = vmatpush1.msra.mxu0 %v876
        %904 = vmatprep.subr.mxu0 0.0
        %905 = vmatpush1.msra.mxu0 %v875
        %906 = vmatprep.subr.mxu0 0.0
        %907 = vmatpush1.msra.mxu0 %v874
        %908 = vmatprep.subr.mxu0 0.0
        %909 = vmatpush1.msra.mxu0 %v873
        %910 = vmatprep.subr.mxu0 0.0
        %911 = vmatpush1.msra.mxu0 %v872
        %912 = vmatprep.subr.mxu0 0.0
        %913 = vmatpush1.msra.mxu0 %v871
        %914 = vmatprep.subr.mxu0 0.0
        %915 = vmatpush1.msra.mxu0 %v870
        %916 = vmatprep.subr.mxu0 0.0
        %917 = vmatpush1.msra.mxu0 %v869
        %918 = vmatprep.subr.mxu0 0.0
        %919 = vmatpush1.msra.mxu0 %v868
        %920 = vmatprep.subr.mxu0 0.0
        %921 = vmatpush1.msra.mxu0 %v867
        %922 = vmatprep.subr.mxu0 0.0
        %923 = vmatpush1.msra.mxu0 %v866
        %924 = vmatprep.subr.mxu0 0.0
        %925 = vmatpush1.msra.mxu0 %v865
        %926 = vmatprep.subr.mxu0 0.0
        %927 = vmatpush1.msra.mxu0 %v864
        %928 = vmatprep.subr.mxu0 0.0
        %929 = vmatpush2.msra.mxu0 %v895
        %930 = vmatprep.subr.mxu0 0.0
        %931 = vmatpush2.msra.mxu0 %v894
        %932 = vmatprep.subr.mxu0 0.0
        %933 = vmatpush2.msra.mxu0 %v893
        %934 = vmatprep.subr.mxu0 0.0
        %935 = vmatpush2.msra.mxu0 %v892
        %936 = vmatprep.subr.mxu0 0.0
        %937 = vmatpush2.msra.mxu0 %v891
        %938 = vmatprep.subr.mxu0 0.0
        %939 = vmatpush2.msra.mxu0 %v890
        %940 = vmatprep.subr.mxu0 0.0
        %941 = vmatpush2.msra.mxu0 %v889
        %942 = vmatprep.subr.mxu0 0.0
        %943 = vmatpush2.msra.mxu0 %v888
        %944 = vmatprep.subr.mxu0 0.0
        %945 = vmatpush2.msra.mxu0 %v887
        %946 = vmatprep.subr.mxu0 0.0
        %947 = vmatpush2.msra.mxu0 %v886
        %948 = vmatprep.subr.mxu0 0.0
        %949 = vmatpush2.msra.mxu0 %v885
        %950 = vmatprep.subr.mxu0 0.0
        %951 = vmatpush2.msra.mxu0 %v884
        %952 = vmatprep.subr.mxu0 0.0
        %953 = vmatpush2.msra.mxu0 %v883
        %954 = vmatprep.subr.mxu0 0.0
        %955 = vmatpush2.msra.mxu0 %v882
        %956 = vmatprep.subr.mxu0 0.0
        %957 = vmatpush2.msra.mxu0 %v881
        %958 = vmatprep.subr.mxu0 0.0
        %959 = vmatpush2.msra.mxu0 %v880
        %960 = vmatprep.mubr.f32.mxu0 %v859
        %961 = vmatmul.mubr.f32.gmra.mxu0 %v858
        %v962 = vpop.f32.mrf.mxu0
        %v963 = vadd.f32 0.0, %v962
        %v964 = vpop.f32.mrf.mxu0
        %965 = vmatprep.mubr.f32.mxu0 %v861
        %966 = vmatmul.mubr.f32.gmra.mxu0 %v860
        %v967 = vpop.f32.mrf.mxu0
        %v968 = vadd.f32 0.0, %v967
        %v969 = vpop.f32.mrf.mxu0
        %970 = vmatprep.mubr.f32.mxu0 %v863
        %971 = vmatmul.mubr.f32.gmra.mxu0 %v862
        %v972 = vpop.f32.mrf.mxu0
        %v973 = vadd.f32 0.0, %v972
        %v974 = vpop.f32.mrf.mxu0
        %975 = vdwg.mxu0
        %976 = vst [vmem:[%s331] sm:$0xff] %v963
        %977 = vst [vmem:[%s331 + $0x8] sm:$0xff] %v968
        %978 = vst [vmem:[%s331 + $0x10] sm:$0xff] %v973
        %v979 = vmul.f32 %v839, %v464
        %v980 = vmul.f32 %v841, %v465
        %v981 = vmul.f32 %v847, %v466
        %v982 = vmul.f32 %v849, %v467
        %v983 = vmul.f32 %v855, %v468
        %v984 = vmul.f32 %v857, %v469
        %v985 = vld [vmem:[#allocation8] sm:$0xff]
        %v986 = vld [vmem:[#allocation8 + $0x8] sm:$0xff]
        %v987 = vld [vmem:[#allocation8 + $0x10] sm:$0xff]
        %v988 = vld [vmem:[#allocation8 + $0x18] sm:$0xff]
        %v989 = vld [vmem:[#allocation8 + $0x20] sm:$0xff]
        %v990 = vld [vmem:[#allocation8 + $0x28] sm:$0xff]
        %v991 = vld [vmem:[#allocation8 + $0x30] sm:$0xff]
        %v992 = vld [vmem:[#allocation8 + $0x38] sm:$0xff]
        %v993 = vld [vmem:[#allocation8 + $0x40] sm:$0xff]
        %v994 = vld [vmem:[#allocation8 + $0x48] sm:$0xff]
        %v995 = vld [vmem:[#allocation8 + $0x50] sm:$0xff]
        %v996 = vld [vmem:[#allocation8 + $0x58] sm:$0xff]
        %v997 = vld [vmem:[#allocation8 + $0x60] sm:$0xff]
        %v998 = vld [vmem:[#allocation8 + $0x68] sm:$0xff]
        %v999 = vld [vmem:[#allocation8 + $0x70] sm:$0xff]
        %v1000 = vld [vmem:[#allocation8 + $0x78] sm:$0xff]
        %v1001 = vld [vmem:[#allocation8 + $0x80] sm:$0xff]
        %v1002 = vld [vmem:[#allocation8 + $0x88] sm:$0xff]
        %v1003 = vld [vmem:[#allocation8 + $0x90] sm:$0xff]
        %v1004 = vld [vmem:[#allocation8 + $0x98] sm:$0xff]
        %v1005 = vld [vmem:[#allocation8 + $0xa0] sm:$0xff]
        %v1006 = vld [vmem:[#allocation8 + $0xa8] sm:$0xff]
        %v1007 = vld [vmem:[#allocation8 + $0xb0] sm:$0xff]
        %v1008 = vld [vmem:[#allocation8 + $0xb8] sm:$0xff]
        %v1009 = vld [vmem:[#allocation8 + $0xc0] sm:$0xff]
        %v1010 = vld [vmem:[#allocation8 + $0xc8] sm:$0xff]
        %v1011 = vld [vmem:[#allocation8 + $0xd0] sm:$0xff]
        %v1012 = vld [vmem:[#allocation8 + $0xd8] sm:$0xff]
        %v1013 = vld [vmem:[#allocation8 + $0xe0] sm:$0xff]
        %v1014 = vld [vmem:[#allocation8 + $0xe8] sm:$0xff]
        %v1015 = vld [vmem:[#allocation8 + $0xf0] sm:$0xff]
        %v1016 = vld [vmem:[#allocation8 + $0xf8] sm:$0xff]
        %1017 = vmatprep.subr.mxu0 0.0
        %1018 = vmatpush1.msra.mxu0 %v1000
        %1019 = vmatprep.subr.mxu0 0.0
        %1020 = vmatpush1.msra.mxu0 %v999
        %1021 = vmatprep.subr.mxu0 0.0
        %1022 = vmatpush1.msra.mxu0 %v998
        %1023 = vmatprep.subr.mxu0 0.0
        %1024 = vmatpush1.msra.mxu0 %v997
        %1025 = vmatprep.subr.mxu0 0.0
        %1026 = vmatpush1.msra.mxu0 %v996
        %1027 = vmatprep.subr.mxu0 0.0
        %1028 = vmatpush1.msra.mxu0 %v995
        %1029 = vmatprep.subr.mxu0 0.0
        %1030 = vmatpush1.msra.mxu0 %v994
        %1031 = vmatprep.subr.mxu0 0.0
        %1032 = vmatpush1.msra.mxu0 %v993
        %1033 = vmatprep.subr.mxu0 0.0
        %1034 = vmatpush1.msra.mxu0 %v992
        %1035 = vmatprep.subr.mxu0 0.0
        %1036 = vmatpush1.msra.mxu0 %v991
        %1037 = vmatprep.subr.mxu0 0.0
        %1038 = vmatpush1.msra.mxu0 %v990
        %1039 = vmatprep.subr.mxu0 0.0
        %1040 = vmatpush1.msra.mxu0 %v989
        %1041 = vmatprep.subr.mxu0 0.0
        %1042 = vmatpush1.msra.mxu0 %v988
        %1043 = vmatprep.subr.mxu0 0.0
        %1044 = vmatpush1.msra.mxu0 %v987
        %1045 = vmatprep.subr.mxu0 0.0
        %1046 = vmatpush1.msra.mxu0 %v986
        %1047 = vmatprep.subr.mxu0 0.0
        %1048 = vmatpush1.msra.mxu0 %v985
        %1049 = vmatprep.subr.mxu0 0.0
        %1050 = vmatpush2.msra.mxu0 %v1016
        %1051 = vmatprep.subr.mxu0 0.0
        %1052 = vmatpush2.msra.mxu0 %v1015
        %1053 = vmatprep.subr.mxu0 0.0
        %1054 = vmatpush2.msra.mxu0 %v1014
        %1055 = vmatprep.subr.mxu0 0.0
        %1056 = vmatpush2.msra.mxu0 %v1013
        %1057 = vmatprep.subr.mxu0 0.0
        %1058 = vmatpush2.msra.mxu0 %v1012
        %1059 = vmatprep.subr.mxu0 0.0
        %1060 = vmatpush2.msra.mxu0 %v1011
        %1061 = vmatprep.subr.mxu0 0.0
        %1062 = vmatpush2.msra.mxu0 %v1010
        %1063 = vmatprep.subr.mxu0 0.0
        %1064 = vmatpush2.msra.mxu0 %v1009
        %1065 = vmatprep.subr.mxu0 0.0
        %1066 = vmatpush2.msra.mxu0 %v1008
        %1067 = vmatprep.subr.mxu0 0.0
        %1068 = vmatpush2.msra.mxu0 %v1007
        %1069 = vmatprep.subr.mxu0 0.0
        %1070 = vmatpush2.msra.mxu0 %v1006
        %1071 = vmatprep.subr.mxu0 0.0
        %1072 = vmatpush2.msra.mxu0 %v1005
        %1073 = vmatprep.subr.mxu0 0.0
        %1074 = vmatpush2.msra.mxu0 %v1004
        %1075 = vmatprep.subr.mxu0 0.0
        %1076 = vmatpush2.msra.mxu0 %v1003
        %1077 = vmatprep.subr.mxu0 0.0
        %1078 = vmatpush2.msra.mxu0 %v1002
        %1079 = vmatprep.subr.mxu0 0.0
        %1080 = vmatpush2.msra.mxu0 %v1001
        %1081 = vmatprep.mubr.f32.mxu0 %v980
        %1082 = vmatmul.mubr.f32.gmra.mxu0 %v979
        %v1083 = vpop.f32.mrf.mxu0
        %v1084 = vadd.f32 0.0, %v1083
        %v1085 = vpop.f32.mrf.mxu0
        %1086 = vmatprep.mubr.f32.mxu0 %v982
        %1087 = vmatmul.mubr.f32.gmra.mxu0 %v981
        %v1088 = vpop.f32.mrf.mxu0
        %v1089 = vadd.f32 0.0, %v1088
        %v1090 = vpop.f32.mrf.mxu0
        %1091 = vmatprep.mubr.f32.mxu0 %v984
        %1092 = vmatmul.mubr.f32.gmra.mxu0 %v983
        %v1093 = vpop.f32.mrf.mxu0
        %v1094 = vadd.f32 0.0, %v1093
        %v1095 = vpop.f32.mrf.mxu0
        %1096 = vdwg.mxu0
        %s1097 = scalar_lea.vmem %s331, 24 [#allocation10]
        %1098 = vst [vmem:[%s1097] sm:$0xff] %v1084
        %1099 = vst [vmem:[%s1097 + $0x8] sm:$0xff] %v1089
        %1100 = vst [vmem:[%s1097 + $0x10] sm:$0xff] %v1094
        %s1101 = sand.u32 %s180, 1
        %s1102 = scalar_lea.sflag [#allocation4], %s1101
        %s1103 = sand.u32 %s180, 1
        %s1104 = smul.addr %s1103, 48
        %s1105 = scalar_lea.vmem [#allocation10], %s1104
        // Predicated region
        $region61: #{tpu_custom_call.1} parent=43 // pred_check
          %p1106 = pneg %p190
        $region62: #{tpu_custom_call.1} parent=43 // pred_check_branch
          %1108 = sbr.rel (%p1106) target = $region64
        $region63: #{tpu_custom_call.1} parent=43 // pred_region
          %s1109 = smul.u32 3, %s30
          %s1111 = ssub.s32 768, 768
          %1112 = vsyncadd %s1102, %s1111
          %s1113 = smul.addr %s29, 6
          %s1114 = sadd.s32 %s1109, %s1113
          %s1115 = smul.addr %s1114, 128
          %s1116 = scalar_lea.hbm %s6, %s1115
          %s1117 = sshll.u32 %s1105, 4
          %s1118 = int_to_ptr.vmem [resolvable:$true] %s1117
          %1123 = dma.vmem_to_hbm [thread:$0]  %s1118, 768, %s1116, %s1102, 128, 128, 8
        $region64: #{tpu_custom_call.1} parent=43 // pred_fallthru
          _
      $region44: #{tpu_custom_call.1} parent=5 // pred_fallthru
        _
      %p1124 = scmp.le.s32.totalorder 2, %s20
      // Predicated region
      $region65: #{tpu_custom_call.1} parent=5 // pred_check
        %p1125 = pneg %p1124
      $region66: #{tpu_custom_call.1} parent=5 // pred_check_branch
        %1127 = sbr.rel (%p1125) target = $region68
      $region67: #{tpu_custom_call.1} parent=5 // pred_region
        %s1128 = ssub.s32 %s20, 2
        // Predicated region
        $region69: #{tpu_custom_call.1} parent=67 // pred_check
          %p1129 = pneg %p196
        $region70: #{tpu_custom_call.1} parent=67 // pred_check_branch
          %1131 = sbr.rel (%p1129) target = $region72
        $region71: #{tpu_custom_call.1} parent=67 // pred_region
          %s1132 = sand.u32 %s181, 1
          %s1133 = scalar_lea.sflag [#allocation4], %s1132
          %s1134 = sand.u32 %s181, 1
          %s1135 = smul.addr %s1134, 48
          %s1136 = scalar_lea.vmem [#allocation10], %s1135
          %1137 = dma.done %s1133, 768
        $region72: #{tpu_custom_call.1} parent=67 // pred_fallthru
          _
      $region68: #{tpu_custom_call.1} parent=5 // pred_fallthru
        _
    $region6: #{tpu_custom_call.1} parent=1 // loop_footer
      %s24 = sadd.s32 1, %s20
    $region7: #{tpu_custom_call.1} parent=1 // loop_footer_branch
      %19 = sbr.rel target = $region3
    $region8: #{tpu_custom_call.1} parent=1 // loop_exit
      _
    %1138 = vsyncpa [#allocation3], 1
    %s1139 = scalar_lea.sflag [#allocation3], 1
    %1140 = vsyncpa %s1139, 1
    %1141 = vsyncpa [#allocation6], 1
    %1142 = vsyncpa [#allocation9], 1
    %1143 = vsyncpa [#allocation4], 1
    %s1144 = scalar_lea.sflag [#allocation4], 1
    %1145 = vsyncpa %s1144, 1

</llo_original>
